<compile_context>
chip_gen: v6e
topology: v6e:2x2x1
jax: 0.10.0
libtpu: 0.0.40
codegen_flags: <defaults>
</compile_context>

<pallas_src>
import jax
import jax.numpy as jnp
from jax.experimental import pallas as pl
from jax.experimental.pallas import tpu as pltpu

DROPOUT_P = 0.2
MULTIPLIER = 4


def _ffn_compute(x_ref, w1_ref, b1_ref, w2_ref, b2_ref):
    """relu(x @ W1 + b1) @ W2 + b2 for one row tile. bf16 matmuls, f32 accum."""
    x = x_ref[...]                                            # (tm, C), bf16
    h = jnp.dot(x, w1_ref[...], preferred_element_type=jnp.float32)
    h = jnp.maximum(h + b1_ref[...], 0.0)                     # f32 bias + ReLU
    out = jnp.dot(h.astype(w2_ref.dtype), w2_ref[...],
                  preferred_element_type=jnp.float32)
    return out + b2_ref[...]


def _ffn_kernel_eval(x_ref, w1_ref, b1_ref, w2_ref, b2_ref, o_ref):
    o_ref[...] = _ffn_compute(x_ref, w1_ref, b1_ref, w2_ref, b2_ref).astype(o_ref.dtype)


def _ffn_kernel_train(x_ref, w1_ref, b1_ref, w2_ref, b2_ref, u_ref, o_ref):
    out = _ffn_compute(x_ref, w1_ref, b1_ref, w2_ref, b2_ref)
    # Inverted dropout: keep with prob (1 - p), scale kept values by 1/(1 - p).
    keep = u_ref[...] >= DROPOUT_P
    out = jnp.where(keep, out * (1.0 / (1.0 - DROPOUT_P)), 0.0)
    o_ref[...] = out.astype(o_ref.dtype)


def feed_forward(x, params, *, training=False, rng_key=None, tile_m=256,
                 compute_dtype=jnp.bfloat16):
    """x: (B, T, C). params = (w1, b1, w2, b2) stored in f32."""
    B, T, C = x.shape
    M = B * T
    w1, b1, w2, b2 = params
    H = w1.shape[1]
    out_dtype = x.dtype

    # bf16 matmul operands, f32 biases.
    x2 = x.reshape(M, C).astype(compute_dtype)
    w1c = w1.astype(compute_dtype)
    w2c = w2.astype(compute_dtype)
    b1f = b1.astype(jnp.float32)
    b2f = b2.astype(jnp.float32)

    # Row tile: multiple of 16 (bf16 sublane packing), no larger than needed.
    tm = max(16, min(int(tile_m), -(-M // 16) * 16))
    grid = (pl.cdiv(M, tm),)

    def weight_spec(shape):
        # Grid-invariant operand: single-buffer it (no need to double-buffer).
        return pl.BlockSpec(shape, lambda i: (0, 0), pipeline_mode=pl.Buffered(1))

    in_specs = [
        pl.BlockSpec((tm, C), lambda i: (i, 0)),   # x tile (double-buffered)
        weight_spec((C, H)),                       # W1 (whole)
        weight_spec((1, H)),                       # b1
        weight_spec((H, C)),                       # W2 (whole)
        weight_spec((1, C)),                       # b2
    ]
    inputs = [x2, w1c, b1f, w2c, b2f]

    if training:
        if rng_key is None:
            rng_key = jax.random.PRNGKey(0)
        u = jax.random.uniform(rng_key, (M, C), dtype=jnp.float32)
        in_specs.append(pl.BlockSpec((tm, C), lambda i: (i, 0)))
        inputs.append(u)
        kernel = _ffn_kernel_train
    else:
        kernel = _ffn_kernel_eval

    # VMEM budget: x/out double buffers + single-buffered weights + f32 temps.
    csize = x2.dtype.itemsize
    osize = x.dtype.itemsize
    vmem_needed = (2 * tm * C * csize              # x (double-buffered)
                   + 2 * tm * C * osize            # out (double-buffered)
                   + 2 * C * H * csize             # W1 + W2 (single-buffered)
                   + (H + C) * 4                   # biases
                   + tm * H * 4 + tm * C * 4)      # f32 intermediates
    if training:
        vmem_needed += 2 * tm * C * 4              # dropout randoms
    vmem_limit = int(min(max(2 * vmem_needed, 32 * 1024 * 1024),
                         64 * 1024 * 1024))

    bytes_accessed = sum(int(a.size) * a.dtype.itemsize for a in inputs) + M * C * osize
    cost = pl.CostEstimate(flops=4 * M * C * H, transcendentals=0,
                           bytes_accessed=int(bytes_accessed))

    out = pl.pallas_call(
        kernel,
        out_shape=jax.ShapeDtypeStruct((M, C), out_dtype),
        grid_spec=pltpu.PrefetchScalarGridSpec(
            num_scalar_prefetch=0,
            grid=grid,
            in_specs=in_specs,
            out_specs=pl.BlockSpec((tm, C), lambda i: (i, 0)),
        ),
        compiler_params=pltpu.CompilerParams(
            dimension_semantics=("parallel",),
            vmem_limit_bytes=vmem_limit),
        cost_estimate=cost,
    )(*inputs)

    return out.reshape(B, T, C)


def init_params(key, n_embd, dtype=jnp.float32):
    """Deterministic init matching nn.Linear's U(-1/sqrt(fan_in), 1/sqrt(fan_in))."""
    hidden = MULTIPLIER * n_embd
    k1, k2, k3, k4 = jax.random.split(key, 4)
    lim1 = 1.0 / jnp.sqrt(n_embd)
    lim2 = 1.0 / jnp.sqrt(hidden)
    w1 = jax.random.uniform(k1, (n_embd, hidden), dtype, -lim1, lim1)
    b1 = jax.random.uniform(k2, (1, hidden),      dtype, -lim1, lim1)
    w2 = jax.random.uniform(k3, (hidden, n_embd), dtype, -lim2, lim2)
    b2 = jax.random.uniform(k4, (1, n_embd),      dtype, -lim2, lim2)
    return w1, b1, w2, b2


if __name__ == "__main__":
    key = jax.random.PRNGKey(0)
    k_param, k_x, k_drop = jax.random.split(key, 3)

    B, T, n_embd = 2, 128, 128          # C = 128, hidden = 512 (lane-dense dims)
    params = init_params(k_param, n_embd)
    x = jax.random.normal(k_x, (B, T, n_embd), jnp.float32)

    # Eval-mode forward (dropout = identity); tile_m=128 -> 2 grid steps.
    y_eval = feed_forward(x, params, training=False, tile_m=128)
    jax.block_until_ready(y_eval)

    # Reference with the same bf16-operand / f32-accumulate arithmetic.
    w1, b1, w2, b2 = params
    x2 = x.reshape(-1, n_embd).astype(jnp.bfloat16)
    h = jnp.maximum(
        jnp.dot(x2, w1.astype(jnp.bfloat16),
                preferred_element_type=jnp.float32) + b1, 0.0)
    ref = (jnp.dot(h.astype(jnp.bfloat16), w2.astype(jnp.bfloat16),
                   preferred_element_type=jnp.float32) + b2).reshape(B, T, n_embd)
    assert jnp.allclose(y_eval, ref, atol=2e-2, rtol=2e-2), "eval mismatch vs reference"

    # Training-mode forward: dropout mask is deterministic given k_drop.
    y_train = feed_forward(x, params, training=True, rng_key=k_drop, tile_m=128)
    jax.block_until_ready(y_train)

    u = jax.random.uniform(k_drop, (B * T, n_embd), dtype=jnp.float32)
    keep = (u >= DROPOUT_P).reshape(B, T, n_embd)
    ref_train = jnp.where(keep, ref / (1.0 - DROPOUT_P), 0.0)
    assert jnp.allclose(y_train, ref_train, atol=3e-2, rtol=3e-2), "train mismatch vs reference"

    print("KERNEL_OK")
</pallas_src>

<mosaic_0001>
module attributes {stable_mosaic.version = 11 : i64} {
  func.func @_ffn_kernel_eval(%arg0: i32, %arg1: memref<128x128xbf16, #tpu.memory_space<vmem>>, %arg2: memref<128x512xbf16, #tpu.memory_space<vmem>>, %arg3: memref<1x512xf32, #tpu.memory_space<vmem>>, %arg4: memref<512x128xbf16, #tpu.memory_space<vmem>>, %arg5: memref<1x128xf32, #tpu.memory_space<vmem>>, %arg6: memref<128x128xf32, #tpu.memory_space<vmem>>) attributes {dimension_semantics = [#tpu.dimension_semantics<parallel>], iteration_bounds = array<i64: 2>, scalar_prefetch = 0 : i64, scratch_operands = 0 : i64, tpu.core_type = #tpu.core_type<tc>, window_params = [{transform_indices = @transform_0, window_bounds = array<i64: 128, 128>}, {pipeline_mode = #tpu.pipeline_mode<synchronous>, transform_indices = @transform_1, window_bounds = array<i64: 128, 512>}, {pipeline_mode = #tpu.pipeline_mode<synchronous>, transform_indices = @transform_2, window_bounds = array<i64: 1, 512>}, {pipeline_mode = #tpu.pipeline_mode<synchronous>, transform_indices = @transform_3, window_bounds = array<i64: 512, 128>}, {pipeline_mode = #tpu.pipeline_mode<synchronous>, transform_indices = @transform_4, window_bounds = array<i64: 1, 128>}, {transform_indices = @transform_5, window_bounds = array<i64: 128, 128>}]} {
    %c0 = arith.constant 0 : index
    %c0_0 = arith.constant 0 : index
    %0 = vector.load %arg1[%c0, %c0_0] : memref<128x128xbf16, #tpu.memory_space<vmem>>, vector<128x128xbf16>
    %c0_1 = arith.constant 0 : index
    %c0_2 = arith.constant 0 : index
    %1 = vector.load %arg2[%c0_1, %c0_2] : memref<128x512xbf16, #tpu.memory_space<vmem>>, vector<128x512xbf16>
    %cst = arith.constant dense<0.000000e+00> : vector<128x512xf32>
    %2 = tpu.matmul %0, %1, %cst {dimension_numbers = #tpu.dot_dimension_numbers<[1], [0], [0], [1], [0, 0, 1, 1], [], []>} : vector<128x128xbf16>, vector<128x512xbf16>, vector<128x512xf32> -> vector<128x512xf32>
    %c0_3 = arith.constant 0 : index
    %c0_4 = arith.constant 0 : index
    %3 = vector.load %arg3[%c0_3, %c0_4] : memref<1x512xf32, #tpu.memory_space<vmem>>, vector<1x512xf32>
    %4 = vector.broadcast %3 : vector<1x512xf32> to vector<128x512xf32>
    %5 = arith.addf %2, %4 : vector<128x512xf32>
    %cst_5 = arith.constant 0.000000e+00 : f32
    %6 = vector.broadcast %cst_5 : f32 to vector<128x512xf32>
    %7 = arith.maximumf %5, %6 : vector<128x512xf32>
    %8 = arith.truncf %7 : vector<128x512xf32> to vector<128x512xbf16>
    %c0_6 = arith.constant 0 : index
    %c0_7 = arith.constant 0 : index
    %9 = vector.load %arg4[%c0_6, %c0_7] : memref<512x128xbf16, #tpu.memory_space<vmem>>, vector<512x128xbf16>
    %cst_8 = arith.constant dense<0.000000e+00> : vector<128x128xf32>
    %10 = tpu.matmul %8, %9, %cst_8 {dimension_numbers = #tpu.dot_dimension_numbers<[1], [0], [0], [1], [0, 0, 1, 1], [], []>} : vector<128x512xbf16>, vector<512x128xbf16>, vector<128x128xf32> -> vector<128x128xf32>
    %c0_9 = arith.constant 0 : index
    %c0_10 = arith.constant 0 : index
    %11 = vector.load %arg5[%c0_9, %c0_10] : memref<1x128xf32, #tpu.memory_space<vmem>>, vector<1x128xf32>
    %12 = vector.broadcast %11 : vector<1x128xf32> to vector<128x128xf32>
    %13 = arith.addf %10, %12 : vector<128x128xf32>
    %c0_11 = arith.constant 0 : index
    %c0_12 = arith.constant 0 : index
    %14 = vector.load %arg6[%c0_11, %c0_12] : memref<128x128xf32, #tpu.memory_space<vmem>>, vector<128x128xf32>
    tpu.vector_store %arg6[%c0_11, %c0_12], %13 {strides = array<i32>} : memref<128x128xf32, #tpu.memory_space<vmem>>, vector<128x128xf32>,
    return
  }
  func.func @transform_0(%arg0: i32) -> (i32, i32) {
    %c0_i32 = arith.constant 0 : i32
    %c0_i32_0 = arith.constant 0 : i32
    return %arg0, %c0_i32 : i32, i32
  }
  func.func @transform_1(%arg0: i32) -> (i32, i32) {
    %c0_i32 = arith.constant 0 : i32
    %c0_i32_0 = arith.constant 0 : i32
    %c0_i32_1 = arith.constant 0 : i32
    return %c0_i32, %c0_i32_0 : i32, i32
  }
  func.func @transform_2(%arg0: i32) -> (i32, i32) {
    %c0_i32 = arith.constant 0 : i32
    %c0_i32_0 = arith.constant 0 : i32
    %c0_i32_1 = arith.constant 0 : i32
    return %c0_i32, %c0_i32_0 : i32, i32
  }
  func.func @transform_3(%arg0: i32) -> (i32, i32) {
    %c0_i32 = arith.constant 0 : i32
    %c0_i32_0 = arith.constant 0 : i32
    %c0_i32_1 = arith.constant 0 : i32
    return %c0_i32, %c0_i32_0 : i32, i32
  }
  func.func @transform_4(%arg0: i32) -> (i32, i32) {
    %c0_i32 = arith.constant 0 : i32
    %c0_i32_0 = arith.constant 0 : i32
    %c0_i32_1 = arith.constant 0 : i32
    return %c0_i32, %c0_i32_0 : i32, i32
  }
  func.func @transform_5(%arg0: i32) -> (i32, i32) {
    %c0_i32 = arith.constant 0 : i32
    %c0_i32_0 = arith.constant 0 : i32
    return %arg0, %c0_i32 : i32, i32
  }
}

</mosaic_0001>

<llo_original>
// kernel: tpu_custom_call.1
$region0: #{tpu_custom_call.1}
  #allocation0 [shape = 'u32[]', space=smem, size = 0x4, offset = 0x4, fixed_abs, tag = 'smem constant byte address 0x4 - core index']
  #allocation1 [shape = 'u32[144,128]{1,0:T(1,128)}', space=vmem, size = 0x12000, scoped, tag = 'internal scratch']
  %s0 = inlined_call_operand.hbm [shape: bf16[256,128], index: 0, kind: input, shape index: {}]
  %s1 = inlined_call_operand.hbm [shape: bf16[128,512], index: 1, kind: input, shape index: {}]
  %s2 = inlined_call_operand.hbm [shape: f32[1,512], index: 2, kind: input, shape index: {}]
  %s3 = inlined_call_operand.hbm [shape: bf16[512,128], index: 3, kind: input, shape index: {}]
  %s4 = inlined_call_operand.vmem [shape: f32[1,128], index: 4, kind: input, shape index: {}]
  %s5 = inlined_call_operand.hbm [shape: f32[256,128], index: 5, kind: output, shape index: {}]
  %s6 = sld [smem:[#allocation0]]
  $region69: #{tpu_custom_call.1} parent=0
    _
  %s8 = ssub.s32 1, %s6
  %s9 = scalar_select 0, %s8, %s6
  $region1: #{tpu_custom_call.1} parent=0
    #allocation2 [shape = 'u8[65536]{0}', space=vmem, size = 0x10000, scoped, tag = 'input window, operand 0']
    #allocation3 [shape = 's32[2]{0}', space=sflag, size = 0x8, scoped, tag = 'scoped memory for tpu_custom_call.1']
    #allocation4 [shape = 's32[2]{0}', space=sflag, size = 0x8, scoped, tag = 'scoped memory for tpu_custom_call.1']
    #allocation5 [shape = 'u8[131072]{0}', space=vmem, size = 0x20000, scoped, tag = 'input window, operand 1, single buffered']
    #allocation6 [shape = 's32[1]{0}', space=sflag, size = 0x4, scoped, tag = 'scoped memory for tpu_custom_call.1']
    #allocation7 [shape = 'u8[2048]{0}', space=vmem, size = 0x800, scoped, tag = 'input window, operand 2, single buffered']
    #allocation8 [shape = 'u8[131072]{0}', space=vmem, size = 0x20000, scoped, tag = 'input window, operand 3, single buffered']
    #allocation9 [shape = 's32[1]{0}', space=sflag, size = 0x4, scoped, tag = 'scoped memory for tpu_custom_call.1']
    #allocation10 [shape = 'u8[131072]{0}', space=vmem, size = 0x20000, scoped, tag = 'output window, operand 0']
    %10 = vsyncpa [#allocation3], 0
    %s11 = scalar_lea.sflag [#allocation3], 1
    %12 = vsyncpa %s11, 0
    %13 = vsyncpa [#allocation6], 0
    %14 = vsyncpa [#allocation9], 0
    %15 = vsyncpa [#allocation4], 0
    %s16 = scalar_lea.sflag [#allocation4], 1
    %17 = vsyncpa %s16, 0
    loop: start=0, step=1, limit=4
    $region2: #{tpu_custom_call.1} parent=1 // loop_pre_header
      _
    $region3: #{tpu_custom_call.1} parent=1 // loop_header
      %s19 = sphi 0, %s23
      %p20 = scmp.ge.s32.totalorder %s19, 4
      %s29 = sphi 0, %s31
      %s32 = sphi 0, %s29
      %s33 = sphi 0, %s32
      %s49 = sphi 0, %s33
      %s53 = sphi 0, %s53
      %s55 = sphi 0, %s53
      %s56 = sphi 0, %s55
      %s70 = sphi 0, %s56
      %s74 = sphi 0, %s74
      %s76 = sphi 0, %s74
      %s77 = sphi 0, %s76
      %s91 = sphi 0, %s77
      %s95 = sphi 0, %s95
      %s97 = sphi 0, %s95
      %s98 = sphi 0, %s97
      %s112 = sphi 0, %s98
      %s116 = sphi 0, %s116
      %s118 = sphi 0, %s116
      %s119 = sphi 0, %s118
      %s133 = sphi 0, %s119
      %s139 = sphi 0, %s141
      %s142 = sphi 0, %s139
      %s143 = sphi 0, %s142
      %s159 = sphi 0, %s143
    $region4: #{tpu_custom_call.1} parent=1 // loop_header_branch
      %22 = sbr.rel (%p20) target = $region8
    $region5: #{tpu_custom_call.1} parent=1 // loop_body
      %s24 = ssub.s32 %s19, 1
      %s25 = ssub.s32 %s19, 2
      %s26 = sadd.s32 %s19, 1
      %s27 = ssub.s32 %s19, %s26
      %p28 = scmp.eq.s32.totalorder %s27, 0
      %s30 = sadd.s32 %s29, 1
      %s31 = scalar_select %p28, %s29, %s30
      %p34 = pneg %p28
      %p35 = scmp.eq.s32.totalorder %s19, 1
      %p36 = por %p34, %p35
      %p37 = scmp.ne.s32.totalorder %s29, %s32
      %p38 = scmp.eq.s32.totalorder %s19, 0
      %p39 = por %p37, %p38
      %p40 = scmp.ne.s32.totalorder %s29, %s32
      %p41 = scmp.eq.s32.totalorder %s24, 1
      %p42 = por %p40, %p41
      %p43 = scmp.ne.s32.totalorder %s32, %s33
      %p44 = scmp.eq.s32.totalorder %s24, 0
      %p45 = por %p43, %p44
      %p46 = scmp.ne.s32.totalorder %s32, %s33
      %p47 = scmp.eq.s32.totalorder %s25, 1
      %p48 = por %p46, %p47
      %p50 = scmp.ne.s32.totalorder %s33, %s49
      %p51 = scmp.eq.s32.totalorder %s25, 0
      %p52 = por %p50, %p51
      %s54 = sadd.s32 %s53, 1
      %p57 = scmp.eq.s32.totalorder %s19, 1
      %p58 = scmp.ne.s32.totalorder %s53, %s55
      %p59 = scmp.eq.s32.totalorder %s19, 0
      %p60 = por %p58, %p59
      %p61 = scmp.ne.s32.totalorder %s53, %s55
      %p62 = scmp.eq.s32.totalorder %s24, 1
      %p63 = por %p61, %p62
      %p64 = scmp.ne.s32.totalorder %s55, %s56
      %p65 = scmp.eq.s32.totalorder %s24, 0
      %p66 = por %p64, %p65
      %p67 = scmp.ne.s32.totalorder %s55, %s56
      %p68 = scmp.eq.s32.totalorder %s25, 1
      %p69 = por %p67, %p68
      %p71 = scmp.ne.s32.totalorder %s56, %s70
      %p72 = scmp.eq.s32.totalorder %s25, 0
      %p73 = por %p71, %p72
      %s75 = sadd.s32 %s74, 1
      %p78 = scmp.eq.s32.totalorder %s19, 1
      %p79 = scmp.ne.s32.totalorder %s74, %s76
      %p80 = scmp.eq.s32.totalorder %s19, 0
      %p81 = por %p79, %p80
      %p82 = scmp.ne.s32.totalorder %s74, %s76
      %p83 = scmp.eq.s32.totalorder %s24, 1
      %p84 = por %p82, %p83
      %p85 = scmp.ne.s32.totalorder %s76, %s77
      %p86 = scmp.eq.s32.totalorder %s24, 0
      %p87 = por %p85, %p86
      %p88 = scmp.ne.s32.totalorder %s76, %s77
      %p89 = scmp.eq.s32.totalorder %s25, 1
      %p90 = por %p88, %p89
      %p92 = scmp.ne.s32.totalorder %s77, %s91
      %p93 = scmp.eq.s32.totalorder %s25, 0
      %p94 = por %p92, %p93
      %s96 = sadd.s32 %s95, 1
      %p99 = scmp.eq.s32.totalorder %s19, 1
      %p100 = scmp.ne.s32.totalorder %s95, %s97
      %p101 = scmp.eq.s32.totalorder %s19, 0
      %p102 = por %p100, %p101
      %p103 = scmp.ne.s32.totalorder %s95, %s97
      %p104 = scmp.eq.s32.totalorder %s24, 1
      %p105 = por %p103, %p104
      %p106 = scmp.ne.s32.totalorder %s97, %s98
      %p107 = scmp.eq.s32.totalorder %s24, 0
      %p108 = por %p106, %p107
      %p109 = scmp.ne.s32.totalorder %s97, %s98
      %p110 = scmp.eq.s32.totalorder %s25, 1
      %p111 = por %p109, %p110
      %p113 = scmp.ne.s32.totalorder %s98, %s112
      %p114 = scmp.eq.s32.totalorder %s25, 0
      %p115 = por %p113, %p114
      %s117 = sadd.s32 %s116, 1
      %p120 = scmp.eq.s32.totalorder %s19, 1
      %p121 = scmp.ne.s32.totalorder %s116, %s118
      %p122 = scmp.eq.s32.totalorder %s19, 0
      %p123 = por %p121, %p122
      %p124 = scmp.ne.s32.totalorder %s116, %s118
      %p125 = scmp.eq.s32.totalorder %s24, 1
      %p126 = por %p124, %p125
      %p127 = scmp.ne.s32.totalorder %s118, %s119
      %p128 = scmp.eq.s32.totalorder %s24, 0
      %p129 = por %p127, %p128
      %p130 = scmp.ne.s32.totalorder %s118, %s119
      %p131 = scmp.eq.s32.totalorder %s25, 1
      %p132 = por %p130, %p131
      %p134 = scmp.ne.s32.totalorder %s119, %s133
      %p135 = scmp.eq.s32.totalorder %s25, 0
      %p136 = por %p134, %p135
      %s137 = ssub.s32 %s19, %s26
      %p138 = scmp.eq.s32.totalorder %s137, 0
      %s140 = sadd.s32 %s139, 1
      %s141 = scalar_select %p138, %s139, %s140
      %p144 = pneg %p138
      %p145 = scmp.eq.s32.totalorder %s19, 1
      %p146 = por %p144, %p145
      %p147 = scmp.ne.s32.totalorder %s139, %s142
      %p148 = scmp.eq.s32.totalorder %s19, 0
      %p149 = por %p147, %p148
      %p150 = scmp.ne.s32.totalorder %s139, %s142
      %p151 = scmp.eq.s32.totalorder %s24, 1
      %p152 = por %p150, %p151
      %p153 = scmp.ne.s32.totalorder %s142, %s143
      %p154 = scmp.eq.s32.totalorder %s24, 0
      %p155 = por %p153, %p154
      %p156 = scmp.ne.s32.totalorder %s142, %s143
      %p157 = scmp.eq.s32.totalorder %s25, 1
      %p158 = por %p156, %p157
      %p160 = scmp.ne.s32.totalorder %s143, %s159
      %p161 = scmp.eq.s32.totalorder %s25, 0
      %p162 = por %p160, %p161
      %p163 = scmp.le.s32.totalorder 1, %s19
      %p164 = scmp.lt.s32.totalorder %s19, 3
      %p165 = pnand %p163, %p164
      %p166 = pneg %p165
      // Predicated region
      $region9: #{tpu_custom_call.1} parent=5 // pred_check
        _
      $region10: #{tpu_custom_call.1} parent=5 // pred_check_branch
        %168 = sbr.rel (%p165) target = $region12
      $region11: #{tpu_custom_call.1} parent=5 // pred_region
        %s169 = ssub.s32 %s19, 1
        // Predicated region
        $region13: #{tpu_custom_call.1} parent=11 // pred_check
          %p170 = pneg %p66
        $region14: #{tpu_custom_call.1} parent=11 // pred_check_branch
          %172 = sbr.rel (%p170) target = $region16
        $region15: #{tpu_custom_call.1} parent=11 // pred_region
          %s174 = ssub.s32 4096, 4096
          %175 = vsyncadd [#allocation6], %s174
          %s176 = sshll.u32 [#allocation5], 4
          %s177 = int_to_ptr.vmem [resolvable:$true] %s176
          %182 = dma.hbm_to_vmem [thread:$0]  %s1, 4096, %s177, [#allocation6], 256, 256, 16
        $region16: #{tpu_custom_call.1} parent=11 // pred_fallthru
          _
        // Predicated region
        $region17: #{tpu_custom_call.1} parent=11 // pred_check
          %p183 = pneg %p87
        $region18: #{tpu_custom_call.1} parent=11 // pred_check_branch
          %185 = sbr.rel (%p183) target = $region20
        $region19: #{tpu_custom_call.1} parent=11 // pred_region
          %s187 = ssub.s32 64, 64
          %188 = vsyncadd [#allocation6], %s187
          %s190 = sshll.u32 [#allocation7], 4
          %s191 = int_to_ptr.vmem [resolvable:$true] %s190
          %193 = dma.hbm_to_vmem [thread:$0]  %s2, 64, %s191, [#allocation6]
        $region20: #{tpu_custom_call.1} parent=11 // pred_fallthru
          _
        // Predicated region
        $region21: #{tpu_custom_call.1} parent=11 // pred_check
          %p194 = pneg %p108
        $region22: #{tpu_custom_call.1} parent=11 // pred_check_branch
          %196 = sbr.rel (%p194) target = $region24
        $region23: #{tpu_custom_call.1} parent=11 // pred_region
          %s198 = ssub.s32 4096, 4096
          %199 = vsyncadd [#allocation9], %s198
          %s200 = sshll.u32 [#allocation8], 4
          %s201 = int_to_ptr.vmem [resolvable:$true] %s200
          %206 = dma.hbm_to_vmem [thread:$0]  %s3, 4096, %s201, [#allocation9], 64, 64, 4
        $region24: #{tpu_custom_call.1} parent=11 // pred_fallthru
          _
        // Predicated region
        $region25: #{tpu_custom_call.1} parent=11 // pred_check
          %p207 = pneg %p129
        $region26: #{tpu_custom_call.1} parent=11 // pred_check_branch
          %209 = sbr.rel (%p207) target = $region28
        $region27: #{tpu_custom_call.1} parent=11 // pred_region
          _
        $region28: #{tpu_custom_call.1} parent=11 // pred_fallthru
          _
      $region12: #{tpu_custom_call.1} parent=5 // pred_fallthru
        _
      %p210 = scmp.lt.s32.totalorder %s19, 2
      // Predicated region
      $region29: #{tpu_custom_call.1} parent=5 // pred_check
        %p211 = pneg %p210
      $region30: #{tpu_custom_call.1} parent=5 // pred_check_branch
        %213 = sbr.rel (%p211) target = $region32
      $region31: #{tpu_custom_call.1} parent=5 // pred_region
        // Predicated region
        $region33: #{tpu_custom_call.1} parent=31 // pred_check
          %p214 = pneg %p39
        $region34: #{tpu_custom_call.1} parent=31 // pred_check_branch
          %216 = sbr.rel (%p214) target = $region36
        $region35: #{tpu_custom_call.1} parent=31 // pred_region
          %s217 = sand.u32 %s29, 1
          %s218 = scalar_lea.sflag [#allocation3], %s217
          %s219 = sand.u32 %s29, 1
          %s220 = smul.addr %s219, 64
          %s221 = scalar_lea.vmem [#allocation2], %s220
          %s222 = smul.u32 16, %s19
          %s224 = ssub.s32 1024, 1024
          %225 = vsyncadd %s218, %s224
          %s226 = smul.addr %s222, 64
          %s227 = scalar_lea.hbm %s0, %s226
          %s228 = sshll.u32 %s221, 4
          %s229 = int_to_ptr.vmem [resolvable:$true] %s228
          %234 = dma.hbm_to_vmem [thread:$0]  %s227, 1024, %s229, %s218, 64, 64, 4
        $region36: #{tpu_custom_call.1} parent=31 // pred_fallthru
          _
      $region32: #{tpu_custom_call.1} parent=5 // pred_fallthru
        _
      %p235 = scmp.le.s32.totalorder 1, %s19
      %p236 = scmp.lt.s32.totalorder %s19, 3
      %p237 = pnand %p235, %p236
      %p238 = pneg %p237
      // Predicated region
      $region37: #{tpu_custom_call.1} parent=5 // pred_check
        _
      $region38: #{tpu_custom_call.1} parent=5 // pred_check_branch
        %240 = sbr.rel (%p237) target = $region40
      $region39: #{tpu_custom_call.1} parent=5 // pred_region
        %s241 = ssub.s32 %s19, 1
        %s242 = sand.u32 %s32, 1
        %s243 = scalar_lea.sflag [#allocation3], %s242
        %s244 = sand.u32 %s32, 1
        %s245 = smul.addr %s244, 64
        %s246 = scalar_lea.vmem [#allocation2], %s245
        // Predicated region
        $region41: #{tpu_custom_call.1} parent=39 // pred_check
          %p247 = pneg %p45
        $region42: #{tpu_custom_call.1} parent=39 // pred_check_branch
          %249 = sbr.rel (%p247) target = $region44
        $region43: #{tpu_custom_call.1} parent=39 // pred_region
          %250 = dma.done %s243, 1024
        $region44: #{tpu_custom_call.1} parent=39 // pred_fallthru
          _
        // Predicated region
        $region45: #{tpu_custom_call.1} parent=39 // pred_check
          %p251 = pneg %p66
        $region46: #{tpu_custom_call.1} parent=39 // pred_check_branch
          %253 = sbr.rel (%p251) target = $region48
        $region47: #{tpu_custom_call.1} parent=39 // pred_region
          %254 = dma.done [#allocation6], 4096
        $region48: #{tpu_custom_call.1} parent=39 // pred_fallthru
          _
        // Predicated region
        $region49: #{tpu_custom_call.1} parent=39 // pred_check
          %p255 = pneg %p87
        $region50: #{tpu_custom_call.1} parent=39 // pred_check_branch
          %257 = sbr.rel (%p255) target = $region52
        $region51: #{tpu_custom_call.1} parent=39 // pred_region
          %258 = dma.done [#allocation6], 64
        $region52: #{tpu_custom_call.1} parent=39 // pred_fallthru
          _
        // Predicated region
        $region53: #{tpu_custom_call.1} parent=39 // pred_check
          %p259 = pneg %p108
        $region54: #{tpu_custom_call.1} parent=39 // pred_check_branch
          %261 = sbr.rel (%p259) target = $region56
        $region55: #{tpu_custom_call.1} parent=39 // pred_region
          %262 = dma.done [#allocation9], 4096
        $region56: #{tpu_custom_call.1} parent=39 // pred_fallthru
          _
        %s263 = sand.u32 %s32, 1
        %s264 = scalar_lea.sflag [#allocation3], %s263
        %s265 = sand.u32 %s32, 1
        %s266 = smul.addr %s265, 64
        %s267 = scalar_lea.vmem [#allocation2], %s266
        %p268 = pneg %p45
        %p269 = pneg %p42
        %p270 = pneg %p66
        %p271 = pneg %p63
        %p272 = pneg %p87
        %p273 = pneg %p84
        %p274 = pneg %p108
        %p275 = pneg %p105
        %p276 = pneg %p129
        %p277 = pneg %p126
        %p278 = pneg %p155
        %p279 = pneg %p152
        %s280 = sand.u32 %s142, 1
        %s281 = scalar_lea.sflag [#allocation4], %s280
        %s282 = sand.u32 %s142, 1
        %s283 = smul.addr %s282, 128
        %s284 = scalar_lea.vmem [#allocation10], %s283
        %s285 = smul.u32 16, %s24
        %s286 = smul.u32 16, %s24
        %v288 = vld [vmem:[%s246] sm:$0xf]
        %v289 = vld [vmem:[%s246 + $0x4] sm:$0xf]
        %v290 = vld [vmem:[%s246 + $0x8] sm:$0xf]
        %v291 = vld [vmem:[%s246 + $0xc] sm:$0xf]
        %v292 = vld [vmem:[%s246 + $0x10] sm:$0xf]
        %v293 = vld [vmem:[%s246 + $0x14] sm:$0xf]
        %v294 = vld [vmem:[%s246 + $0x18] sm:$0xf]
        %v295 = vld [vmem:[%s246 + $0x1c] sm:$0xf]
        %v296 = vld [vmem:[%s246 + $0x20] sm:$0xf]
        %v297 = vld [vmem:[%s246 + $0x24] sm:$0xf]
        %v298 = vld [vmem:[%s246 + $0x28] sm:$0xf]
        %v299 = vld [vmem:[%s246 + $0x2c] sm:$0xf]
        %v300 = vld [vmem:[%s246 + $0x30] sm:$0xf]
        %v301 = vld [vmem:[%s246 + $0x34] sm:$0xf]
        %v302 = vld [vmem:[%s246 + $0x38] sm:$0xf]
        %v303 = vld [vmem:[%s246 + $0x3c] sm:$0xf]
        %v304 = vld [vmem:[#allocation5] sm:$0xff]
        %v305 = vld [vmem:[#allocation5 + $0x8] sm:$0xff]
        %v306 = vld [vmem:[#allocation5 + $0x10] sm:$0xff]
        %v307 = vld [vmem:[#allocation5 + $0x18] sm:$0xff]
        %v308 = vld [vmem:[#allocation5 + $0x20] sm:$0xff]
        %v309 = vld [vmem:[#allocation5 + $0x28] sm:$0xff]
        %v310 = vld [vmem:[#allocation5 + $0x30] sm:$0xff]
        %v311 = vld [vmem:[#allocation5 + $0x38] sm:$0xff]
        %v312 = vld [vmem:[#allocation5 + $0x40] sm:$0xff]
        %v313 = vld [vmem:[#allocation5 + $0x48] sm:$0xff]
        %v314 = vld [vmem:[#allocation5 + $0x50] sm:$0xff]
        %v315 = vld [vmem:[#allocation5 + $0x58] sm:$0xff]
        %v316 = vld [vmem:[#allocation5 + $0x60] sm:$0xff]
        %v317 = vld [vmem:[#allocation5 + $0x68] sm:$0xff]
        %v318 = vld [vmem:[#allocation5 + $0x70] sm:$0xff]
        %v319 = vld [vmem:[#allocation5 + $0x78] sm:$0xff]
        %v320 = vld [vmem:[#allocation5 + $0x80] sm:$0xff]
        %v321 = vld [vmem:[#allocation5 + $0x88] sm:$0xff]
        %v322 = vld [vmem:[#allocation5 + $0x90] sm:$0xff]
        %v323 = vld [vmem:[#allocation5 + $0x98] sm:$0xff]
        %v324 = vld [vmem:[#allocation5 + $0xa0] sm:$0xff]
        %v325 = vld [vmem:[#allocation5 + $0xa8] sm:$0xff]
        %v326 = vld [vmem:[#allocation5 + $0xb0] sm:$0xff]
        %v327 = vld [vmem:[#allocation5 + $0xb8] sm:$0xff]
        %v328 = vld [vmem:[#allocation5 + $0xc0] sm:$0xff]
        %v329 = vld [vmem:[#allocation5 + $0xc8] sm:$0xff]
        %v330 = vld [vmem:[#allocation5 + $0xd0] sm:$0xff]
        %v331 = vld [vmem:[#allocation5 + $0xd8] sm:$0xff]
        %v332 = vld [vmem:[#allocation5 + $0xe0] sm:$0xff]
        %v333 = vld [vmem:[#allocation5 + $0xe8] sm:$0xff]
        %v334 = vld [vmem:[#allocation5 + $0xf0] sm:$0xff]
        %v335 = vld [vmem:[#allocation5 + $0xf8] sm:$0xff]
        %v336 = vld [vmem:[#allocation7] sm:$0xf]
        %v338 = vlaneseq
        %v339 = vshrl.u32 %v338, 7
        %v340 = vsub.s32 0, %v339
        %v341 = vrot.slane %v336, %v340
        %v342 = vlaneseq
        %v343 = vshrl.u32 %v342, 7
        %v344 = vsub.s32 1, %v343
        %v345 = vrot.slane %v336, %v344
        %v346 = vlaneseq
        %v347 = vshrl.u32 %v346, 7
        %v348 = vsub.s32 2, %v347
        %v349 = vrot.slane %v336, %v348
        %v350 = vlaneseq
        %v351 = vshrl.u32 %v350, 7
        %v352 = vsub.s32 3, %v351
        %v353 = vrot.slane %v336, %v352
        %v374 = vunpack.c.l.b16 %v288
        %v375 = vunpack.c.l.b16 %v289
        %v376 = vunpack.c.l.b16 %v290
        %v377 = vunpack.c.l.b16 %v291
        %v378 = vunpack.c.l.b16 %v292
        %v379 = vunpack.c.l.b16 %v293
        %v380 = vunpack.c.l.b16 %v294
        %v381 = vunpack.c.l.b16 %v295
        %v382 = vunpack.c.l.b16 %v296
        %v383 = vunpack.c.l.b16 %v297
        %v384 = vunpack.c.l.b16 %v298
        %v385 = vunpack.c.l.b16 %v299
        %v386 = vunpack.c.l.b16 %v300
        %v387 = vunpack.c.l.b16 %v301
        %v388 = vunpack.c.l.b16 %v302
        %v389 = vunpack.c.l.b16 %v303
        %v390 = vpack.c.b16 %v375, %v374
        %v391 = vpack.c.b16 %v377, %v376
        %v392 = vpack.c.b16 %v379, %v378
        %v393 = vpack.c.b16 %v381, %v380
        %v394 = vpack.c.b16 %v383, %v382
        %v395 = vpack.c.b16 %v385, %v384
        %v396 = vpack.c.b16 %v387, %v386
        %v397 = vpack.c.b16 %v389, %v388
        %v438 = vunpack.c.l.b16 %v304
        %v439 = vunpack.c.h.b16 %v304
        %v440 = vunpack.c.l.b16 %v305
        %v441 = vunpack.c.h.b16 %v305
        %v442 = vunpack.c.l.b16 %v306
        %v443 = vunpack.c.h.b16 %v306
        %v444 = vunpack.c.l.b16 %v307
        %v445 = vunpack.c.h.b16 %v307
        %v446 = vunpack.c.l.b16 %v308
        %v447 = vunpack.c.h.b16 %v308
        %v448 = vunpack.c.l.b16 %v309
        %v449 = vunpack.c.h.b16 %v309
        %v450 = vunpack.c.l.b16 %v310
        %v451 = vunpack.c.h.b16 %v310
        %v452 = vunpack.c.l.b16 %v311
        %v453 = vunpack.c.h.b16 %v311
        %v454 = vunpack.c.l.b16 %v312
        %v455 = vunpack.c.h.b16 %v312
        %v456 = vunpack.c.l.b16 %v313
        %v457 = vunpack.c.h.b16 %v313
        %v458 = vunpack.c.l.b16 %v314
        %v459 = vunpack.c.h.b16 %v314
        %v460 = vunpack.c.l.b16 %v315
        %v461 = vunpack.c.h.b16 %v315
        %v462 = vunpack.c.l.b16 %v316
        %v463 = vunpack.c.h.b16 %v316
        %v464 = vunpack.c.l.b16 %v317
        %v465 = vunpack.c.h.b16 %v317
        %v466 = vunpack.c.l.b16 %v318
        %v467 = vunpack.c.h.b16 %v318
        %v468 = vunpack.c.l.b16 %v319
        %v469 = vunpack.c.h.b16 %v319
        %v470 = vunpack.c.l.b16 %v320
        %v471 = vunpack.c.h.b16 %v320
        %v472 = vunpack.c.l.b16 %v321
        %v473 = vunpack.c.h.b16 %v321
        %v474 = vunpack.c.l.b16 %v322
        %v475 = vunpack.c.h.b16 %v322
        %v476 = vunpack.c.l.b16 %v323
        %v477 = vunpack.c.h.b16 %v323
        %v478 = vunpack.c.l.b16 %v324
        %v479 = vunpack.c.h.b16 %v324
        %v480 = vunpack.c.l.b16 %v325
        %v481 = vunpack.c.h.b16 %v325
        %v482 = vunpack.c.l.b16 %v326
        %v483 = vunpack.c.h.b16 %v326
        %v484 = vunpack.c.l.b16 %v327
        %v485 = vunpack.c.h.b16 %v327
        %v486 = vunpack.c.l.b16 %v328
        %v487 = vunpack.c.h.b16 %v328
        %v488 = vunpack.c.l.b16 %v329
        %v489 = vunpack.c.h.b16 %v329
        %v490 = vunpack.c.l.b16 %v330
        %v491 = vunpack.c.h.b16 %v330
        %v492 = vunpack.c.l.b16 %v331
        %v493 = vunpack.c.h.b16 %v331
        %v494 = vunpack.c.l.b16 %v332
        %v495 = vunpack.c.h.b16 %v332
        %v496 = vunpack.c.l.b16 %v333
        %v497 = vunpack.c.h.b16 %v333
        %v498 = vunpack.c.l.b16 %v334
        %v499 = vunpack.c.h.b16 %v334
        %v500 = vunpack.c.l.b16 %v335
        %v501 = vunpack.c.h.b16 %v335
        %v502 = vpack.c.b16 %v442, %v438
        %v503 = vpack.c.b16 %v443, %v439
        %v504 = vpack.c.b16 %v444, %v440
        %v505 = vpack.c.b16 %v445, %v441
        %v506 = vpack.c.b16 %v450, %v446
        %v507 = vpack.c.b16 %v451, %v447
        %v508 = vpack.c.b16 %v452, %v448
        %v509 = vpack.c.b16 %v453, %v449
        %v510 = vpack.c.b16 %v458, %v454
        %v511 = vpack.c.b16 %v459, %v455
        %v512 = vpack.c.b16 %v460, %v456
        %v513 = vpack.c.b16 %v461, %v457
        %v514 = vpack.c.b16 %v466, %v462
        %v515 = vpack.c.b16 %v467, %v463
        %v516 = vpack.c.b16 %v468, %v464
        %v517 = vpack.c.b16 %v469, %v465
        %v518 = vpack.c.b16 %v474, %v470
        %v519 = vpack.c.b16 %v475, %v471
        %v520 = vpack.c.b16 %v476, %v472
        %v521 = vpack.c.b16 %v477, %v473
        %v522 = vpack.c.b16 %v482, %v478
        %v523 = vpack.c.b16 %v483, %v479
        %v524 = vpack.c.b16 %v484, %v480
        %v525 = vpack.c.b16 %v485, %v481
        %v526 = vpack.c.b16 %v490, %v486
        %v527 = vpack.c.b16 %v491, %v487
        %v528 = vpack.c.b16 %v492, %v488
        %v529 = vpack.c.b16 %v493, %v489
        %v530 = vpack.c.b16 %v498, %v494
        %v531 = vpack.c.b16 %v499, %v495
        %v532 = vpack.c.b16 %v500, %v496
        %v533 = vpack.c.b16 %v501, %v497
        %566 = vmatprep.subr.bf16.mxu0 %v531
        %567 = vmatpush1.bf16.msra.mxu0 %v530
        %568 = vmatprep.subr.bf16.mxu0 %v527
        %569 = vmatpush1.bf16.msra.mxu0 %v526
        %570 = vmatprep.subr.bf16.mxu0 %v523
        %571 = vmatpush1.bf16.msra.mxu0 %v522
        %572 = vmatprep.subr.bf16.mxu0 %v519
        %573 = vmatpush1.bf16.msra.mxu0 %v518
        %574 = vmatprep.subr.bf16.mxu0 %v515
        %575 = vmatpush1.bf16.msra.mxu0 %v514
        %576 = vmatprep.subr.bf16.mxu0 %v511
        %577 = vmatpush1.bf16.msra.mxu0 %v510
        %578 = vmatprep.subr.bf16.mxu0 %v507
        %579 = vmatpush1.bf16.msra.mxu0 %v506
        %580 = vmatprep.subr.bf16.mxu0 %v503
        %581 = vmatpush1.bf16.msra.mxu0 %v502
        %582 = vmatprep.subr.bf16.mxu0 0
        %583 = vmatpush2.bf16.msra.mxu0 0
        %584 = vmatprep.subr.bf16.mxu0 0
        %585 = vmatpush2.bf16.msra.mxu0 0
        %586 = vmatprep.subr.bf16.mxu0 0
        %587 = vmatpush2.bf16.msra.mxu0 0
        %588 = vmatprep.subr.bf16.mxu0 0
        %589 = vmatpush2.bf16.msra.mxu0 0
        %590 = vmatprep.subr.bf16.mxu0 0
        %591 = vmatpush2.bf16.msra.mxu0 0
        %592 = vmatprep.subr.bf16.mxu0 0
        %593 = vmatpush2.bf16.msra.mxu0 0
        %594 = vmatprep.subr.bf16.mxu0 0
        %595 = vmatpush2.bf16.msra.mxu0 0
        %596 = vmatprep.subr.bf16.mxu0 0
        %597 = vmatpush2.bf16.msra.mxu0 0
        %598 = vmatprep.mubr.bf16.mxu0 0
        %599 = vmatmul.mubr.bf16.gmra.mxu0 %v390
        %v600 = vpop.f32.mrf.mxu0
        %v601 = vadd.f32 %v341, %v600
        %v602 = vpop.f32.mrf.mxu0
        %v603 = vadd.f32 %v345, %v602
        %v604 = vpop.f32.mrf.mxu0
        %v605 = vadd.f32 %v341, %v604
        %v606 = vpop.f32.mrf.mxu0
        %v607 = vadd.f32 %v345, %v606
        %608 = vmatprep.mubr.bf16.mxu0 0
        %609 = vmatmul.mubr.bf16.gmra.mxu0 %v391
        %v610 = vpop.f32.mrf.mxu0
        %v611 = vadd.f32 %v341, %v610
        %v612 = vpop.f32.mrf.mxu0
        %v613 = vadd.f32 %v345, %v612
        %v614 = vpop.f32.mrf.mxu0
        %v615 = vadd.f32 %v341, %v614
        %v616 = vpop.f32.mrf.mxu0
        %v617 = vadd.f32 %v345, %v616
        %618 = vmatprep.mubr.bf16.mxu0 0
        %619 = vmatmul.mubr.bf16.gmra.mxu0 %v392
        %v620 = vpop.f32.mrf.mxu0
        %v621 = vadd.f32 %v341, %v620
        %v622 = vpop.f32.mrf.mxu0
        %v623 = vadd.f32 %v345, %v622
        %v624 = vpop.f32.mrf.mxu0
        %v625 = vadd.f32 %v341, %v624
        %v626 = vpop.f32.mrf.mxu0
        %v627 = vadd.f32 %v345, %v626
        %628 = vmatprep.mubr.bf16.mxu0 0
        %629 = vmatmul.mubr.bf16.gmra.mxu0 %v393
        %v630 = vpop.f32.mrf.mxu0
        %v631 = vadd.f32 %v341, %v630
        %v632 = vpop.f32.mrf.mxu0
        %v633 = vadd.f32 %v345, %v632
        %v634 = vpop.f32.mrf.mxu0
        %v635 = vadd.f32 %v341, %v634
        %v636 = vpop.f32.mrf.mxu0
        %v637 = vadd.f32 %v345, %v636
        %638 = vmatprep.mubr.bf16.mxu0 0
        %639 = vmatmul.mubr.bf16.gmra.mxu0 %v394
        %v640 = vpop.f32.mrf.mxu0
        %v641 = vadd.f32 %v341, %v640
        %v642 = vpop.f32.mrf.mxu0
        %v643 = vadd.f32 %v345, %v642
        %v644 = vpop.f32.mrf.mxu0
        %v645 = vadd.f32 %v341, %v644
        %v646 = vpop.f32.mrf.mxu0
        %v647 = vadd.f32 %v345, %v646
        %648 = vmatprep.mubr.bf16.mxu0 0
        %649 = vmatmul.mubr.bf16.gmra.mxu0 %v395
        %v650 = vpop.f32.mrf.mxu0
        %v651 = vadd.f32 %v341, %v650
        %v652 = vpop.f32.mrf.mxu0
        %v653 = vadd.f32 %v345, %v652
        %v654 = vpop.f32.mrf.mxu0
        %v655 = vadd.f32 %v341, %v654
        %v656 = vpop.f32.mrf.mxu0
        %v657 = vadd.f32 %v345, %v656
        %658 = vmatprep.mubr.bf16.mxu0 0
        %659 = vmatmul.mubr.bf16.gmra.mxu0 %v396
        %v660 = vpop.f32.mrf.mxu0
        %v661 = vadd.f32 %v341, %v660
        %v662 = vpop.f32.mrf.mxu0
        %v663 = vadd.f32 %v345, %v662
        %v664 = vpop.f32.mrf.mxu0
        %v665 = vadd.f32 %v341, %v664
        %v666 = vpop.f32.mrf.mxu0
        %v667 = vadd.f32 %v345, %v666
        %668 = vmatprep.mubr.bf16.mxu0 0
        %669 = vmatmul.mubr.bf16.gmra.mxu0 %v397
        %v670 = vpop.f32.mrf.mxu0
        %v671 = vadd.f32 %v341, %v670
        %v672 = vpop.f32.mrf.mxu0
        %v673 = vadd.f32 %v345, %v672
        %v674 = vpop.f32.mrf.mxu0
        %v675 = vadd.f32 %v341, %v674
        %v676 = vpop.f32.mrf.mxu0
        %v677 = vadd.f32 %v345, %v676
        %678 = vdwg.mxu0
        %679 = vmatprep.subr.bf16.mxu0 %v533
        %680 = vmatpush1.bf16.msra.mxu0 %v532
        %681 = vmatprep.subr.bf16.mxu0 %v529
        %682 = vmatpush1.bf16.msra.mxu0 %v528
        %683 = vmatprep.subr.bf16.mxu0 %v525
        %684 = vmatpush1.bf16.msra.mxu0 %v524
        %685 = vmatprep.subr.bf16.mxu0 %v521
        %686 = vmatpush1.bf16.msra.mxu0 %v520
        %687 = vmatprep.subr.bf16.mxu0 %v517
        %688 = vmatpush1.bf16.msra.mxu0 %v516
        %689 = vmatprep.subr.bf16.mxu0 %v513
        %690 = vmatpush1.bf16.msra.mxu0 %v512
        %691 = vmatprep.subr.bf16.mxu0 %v509
        %692 = vmatpush1.bf16.msra.mxu0 %v508
        %693 = vmatprep.subr.bf16.mxu0 %v505
        %694 = vmatpush1.bf16.msra.mxu0 %v504
        %695 = vmatprep.subr.bf16.mxu0 0
        %696 = vmatpush2.bf16.msra.mxu0 0
        %697 = vmatprep.subr.bf16.mxu0 0
        %698 = vmatpush2.bf16.msra.mxu0 0
        %699 = vmatprep.subr.bf16.mxu0 0
        %700 = vmatpush2.bf16.msra.mxu0 0
        %701 = vmatprep.subr.bf16.mxu0 0
        %702 = vmatpush2.bf16.msra.mxu0 0
        %703 = vmatprep.subr.bf16.mxu0 0
        %704 = vmatpush2.bf16.msra.mxu0 0
        %705 = vmatprep.subr.bf16.mxu0 0
        %706 = vmatpush2.bf16.msra.mxu0 0
        %707 = vmatprep.subr.bf16.mxu0 0
        %708 = vmatpush2.bf16.msra.mxu0 0
        %709 = vmatprep.subr.bf16.mxu0 0
        %710 = vmatpush2.bf16.msra.mxu0 0
        %711 = vmatprep.mubr.bf16.mxu0 0
        %712 = vmatmul.mubr.bf16.gmra.mxu0 %v390
        %v713 = vpop.f32.mrf.mxu0
        %v714 = vadd.f32 %v349, %v713
        %v715 = vpop.f32.mrf.mxu0
        %v716 = vadd.f32 %v353, %v715
        %v717 = vpop.f32.mrf.mxu0
        %v718 = vadd.f32 %v349, %v717
        %v719 = vpop.f32.mrf.mxu0
        %v720 = vadd.f32 %v353, %v719
        %721 = vmatprep.mubr.bf16.mxu0 0
        %722 = vmatmul.mubr.bf16.gmra.mxu0 %v391
        %v723 = vpop.f32.mrf.mxu0
        %v724 = vadd.f32 %v349, %v723
        %v725 = vpop.f32.mrf.mxu0
        %v726 = vadd.f32 %v353, %v725
        %v727 = vpop.f32.mrf.mxu0
        %v728 = vadd.f32 %v349, %v727
        %v729 = vpop.f32.mrf.mxu0
        %v730 = vadd.f32 %v353, %v729
        %731 = vmatprep.mubr.bf16.mxu0 0
        %732 = vmatmul.mubr.bf16.gmra.mxu0 %v392
        %v733 = vpop.f32.mrf.mxu0
        %v734 = vadd.f32 %v349, %v733
        %v735 = vpop.f32.mrf.mxu0
        %v736 = vadd.f32 %v353, %v735
        %v737 = vpop.f32.mrf.mxu0
        %v738 = vadd.f32 %v349, %v737
        %v739 = vpop.f32.mrf.mxu0
        %v740 = vadd.f32 %v353, %v739
        %741 = vmatprep.mubr.bf16.mxu0 0
        %742 = vmatmul.mubr.bf16.gmra.mxu0 %v393
        %v743 = vpop.f32.mrf.mxu0
        %v744 = vadd.f32 %v349, %v743
        %v745 = vpop.f32.mrf.mxu0
        %v746 = vadd.f32 %v353, %v745
        %v747 = vpop.f32.mrf.mxu0
        %v748 = vadd.f32 %v349, %v747
        %v749 = vpop.f32.mrf.mxu0
        %v750 = vadd.f32 %v353, %v749
        %751 = vmatprep.mubr.bf16.mxu0 0
        %752 = vmatmul.mubr.bf16.gmra.mxu0 %v394
        %v753 = vpop.f32.mrf.mxu0
        %v754 = vadd.f32 %v349, %v753
        %v755 = vpop.f32.mrf.mxu0
        %v756 = vadd.f32 %v353, %v755
        %v757 = vpop.f32.mrf.mxu0
        %v758 = vadd.f32 %v349, %v757
        %v759 = vpop.f32.mrf.mxu0
        %v760 = vadd.f32 %v353, %v759
        %761 = vmatprep.mubr.bf16.mxu0 0
        %762 = vmatmul.mubr.bf16.gmra.mxu0 %v395
        %v763 = vpop.f32.mrf.mxu0
        %v764 = vadd.f32 %v349, %v763
        %v765 = vpop.f32.mrf.mxu0
        %v766 = vadd.f32 %v353, %v765
        %v767 = vpop.f32.mrf.mxu0
        %v768 = vadd.f32 %v349, %v767
        %v769 = vpop.f32.mrf.mxu0
        %v770 = vadd.f32 %v353, %v769
        %771 = vmatprep.mubr.bf16.mxu0 0
        %772 = vmatmul.mubr.bf16.gmra.mxu0 %v396
        %v773 = vpop.f32.mrf.mxu0
        %v774 = vadd.f32 %v349, %v773
        %v775 = vpop.f32.mrf.mxu0
        %v776 = vadd.f32 %v353, %v775
        %v777 = vpop.f32.mrf.mxu0
        %v778 = vadd.f32 %v349, %v777
        %v779 = vpop.f32.mrf.mxu0
        %v780 = vadd.f32 %v353, %v779
        %781 = vmatprep.mubr.bf16.mxu0 0
        %782 = vmatmul.mubr.bf16.gmra.mxu0 %v397
        %v783 = vpop.f32.mrf.mxu0
        %v784 = vadd.f32 %v349, %v783
        %v785 = vpop.f32.mrf.mxu0
        %v786 = vadd.f32 %v353, %v785
        %v787 = vpop.f32.mrf.mxu0
        %v788 = vadd.f32 %v349, %v787
        %v789 = vpop.f32.mrf.mxu0
        %v790 = vadd.f32 %v353, %v789
        %791 = vdwg.mxu0
        %v792 = vmax.f32 %v601, 0.0
        %v793 = vmax.f32 %v603, 0.0
        %v794 = vmax.f32 %v714, 0.0
        %v795 = vmax.f32 %v716, 0.0
        %v796 = vmax.f32 %v605, 0.0
        %v797 = vmax.f32 %v607, 0.0
        %v798 = vmax.f32 %v718, 0.0
        %v799 = vmax.f32 %v720, 0.0
        %v800 = vmax.f32 %v611, 0.0
        %v801 = vmax.f32 %v613, 0.0
        %v802 = vmax.f32 %v724, 0.0
        %v803 = vmax.f32 %v726, 0.0
        %v804 = vmax.f32 %v615, 0.0
        %v805 = vmax.f32 %v617, 0.0
        %v806 = vmax.f32 %v728, 0.0
        %v807 = vmax.f32 %v730, 0.0
        %v808 = vmax.f32 %v621, 0.0
        %v809 = vmax.f32 %v623, 0.0
        %v810 = vmax.f32 %v734, 0.0
        %v811 = vmax.f32 %v736, 0.0
        %v812 = vmax.f32 %v625, 0.0
        %v813 = vmax.f32 %v627, 0.0
        %v814 = vmax.f32 %v738, 0.0
        %v815 = vmax.f32 %v740, 0.0
        %v816 = vmax.f32 %v631, 0.0
        %v817 = vmax.f32 %v633, 0.0
        %v818 = vmax.f32 %v744, 0.0
        %v819 = vmax.f32 %v746, 0.0
        %v820 = vmax.f32 %v635, 0.0
        %v821 = vmax.f32 %v637, 0.0
        %v822 = vmax.f32 %v748, 0.0
        %v823 = vmax.f32 %v750, 0.0
        %v824 = vmax.f32 %v641, 0.0
        %v825 = vmax.f32 %v643, 0.0
        %v826 = vmax.f32 %v754, 0.0
        %v827 = vmax.f32 %v756, 0.0
        %v828 = vmax.f32 %v645, 0.0
        %v829 = vmax.f32 %v647, 0.0
        %v830 = vmax.f32 %v758, 0.0
        %v831 = vmax.f32 %v760, 0.0
        %v832 = vmax.f32 %v651, 0.0
        %v833 = vmax.f32 %v653, 0.0
        %v834 = vmax.f32 %v764, 0.0
        %v835 = vmax.f32 %v766, 0.0
        %v836 = vmax.f32 %v655, 0.0
        %v837 = vmax.f32 %v657, 0.0
        %v838 = vmax.f32 %v768, 0.0
        %v839 = vmax.f32 %v770, 0.0
        %v840 = vmax.f32 %v661, 0.0
        %v841 = vmax.f32 %v663, 0.0
        %v842 = vmax.f32 %v774, 0.0
        %v843 = vmax.f32 %v776, 0.0
        %v844 = vmax.f32 %v665, 0.0
        %v845 = vmax.f32 %v667, 0.0
        %v846 = vmax.f32 %v778, 0.0
        %v847 = vmax.f32 %v780, 0.0
        %v848 = vmax.f32 %v671, 0.0
        %v849 = vmax.f32 %v673, 0.0
        %v850 = vmax.f32 %v784, 0.0
        %v851 = vmax.f32 %v786, 0.0
        %v852 = vmax.f32 %v675, 0.0
        %v853 = vmax.f32 %v677, 0.0
        %v854 = vmax.f32 %v788, 0.0
        %v855 = vmax.f32 %v790, 0.0
        %v856 = vpack.c.bf16 %v796, %v792
        %v857 = vpack.c.bf16 %v797, %v793
        %v858 = vpack.c.bf16 %v798, %v794
        %v859 = vpack.c.bf16 %v799, %v795
        %v860 = vpack.c.bf16 %v804, %v800
        %v861 = vpack.c.bf16 %v805, %v801
        %v862 = vpack.c.bf16 %v806, %v802
        %v863 = vpack.c.bf16 %v807, %v803
        %v864 = vpack.c.bf16 %v812, %v808
        %v865 = vpack.c.bf16 %v813, %v809
        %v866 = vpack.c.bf16 %v814, %v810
        %v867 = vpack.c.bf16 %v815, %v811
        %v868 = vpack.c.bf16 %v820, %v816
        %v869 = vpack.c.bf16 %v821, %v817
        %v870 = vpack.c.bf16 %v822, %v818
        %v871 = vpack.c.bf16 %v823, %v819
        %v872 = vpack.c.bf16 %v828, %v824
        %v873 = vpack.c.bf16 %v829, %v825
        %v874 = vpack.c.bf16 %v830, %v826
        %v875 = vpack.c.bf16 %v831, %v827
        %v876 = vpack.c.bf16 %v836, %v832
        %v877 = vpack.c.bf16 %v837, %v833
        %v878 = vpack.c.bf16 %v838, %v834
        %v879 = vpack.c.bf16 %v839, %v835
        %v880 = vpack.c.bf16 %v844, %v840
        %v881 = vpack.c.bf16 %v845, %v841
        %v882 = vpack.c.bf16 %v846, %v842
        %v883 = vpack.c.bf16 %v847, %v843
        %v884 = vpack.c.bf16 %v852, %v848
        %v885 = vpack.c.bf16 %v853, %v849
        %v886 = vpack.c.bf16 %v854, %v850
        %v887 = vpack.c.bf16 %v855, %v851
        %v888 = vld [vmem:[#allocation8] sm:$0xf]
        %v889 = vld [vmem:[#allocation8 + $0x4] sm:$0xf]
        %v890 = vld [vmem:[#allocation8 + $0x8] sm:$0xf]
        %v891 = vld [vmem:[#allocation8 + $0xc] sm:$0xf]
        %v892 = vld [vmem:[#allocation8 + $0x10] sm:$0xf]
        %v893 = vld [vmem:[#allocation8 + $0x14] sm:$0xf]
        %v894 = vld [vmem:[#allocation8 + $0x18] sm:$0xf]
        %v895 = vld [vmem:[#allocation8 + $0x1c] sm:$0xf]
        %v896 = vld [vmem:[#allocation8 + $0x20] sm:$0xf]
        %v897 = vld [vmem:[#allocation8 + $0x24] sm:$0xf]
        %v898 = vld [vmem:[#allocation8 + $0x28] sm:$0xf]
        %v899 = vld [vmem:[#allocation8 + $0x2c] sm:$0xf]
        %v900 = vld [vmem:[#allocation8 + $0x30] sm:$0xf]
        %v901 = vld [vmem:[#allocation8 + $0x34] sm:$0xf]
        %v902 = vld [vmem:[#allocation8 + $0x38] sm:$0xf]
        %v903 = vld [vmem:[#allocation8 + $0x3c] sm:$0xf]
        %v904 = vld [vmem:[#allocation8 + $0x40] sm:$0xf]
        %v905 = vld [vmem:[#allocation8 + $0x44] sm:$0xf]
        %v906 = vld [vmem:[#allocation8 + $0x48] sm:$0xf]
        %v907 = vld [vmem:[#allocation8 + $0x4c] sm:$0xf]
        %v908 = vld [vmem:[#allocation8 + $0x50] sm:$0xf]
        %v909 = vld [vmem:[#allocation8 + $0x54] sm:$0xf]
        %v910 = vld [vmem:[#allocation8 + $0x58] sm:$0xf]
        %v911 = vld [vmem:[#allocation8 + $0x5c] sm:$0xf]
        %v912 = vld [vmem:[#allocation8 + $0x60] sm:$0xf]
        %v913 = vld [vmem:[#allocation8 + $0x64] sm:$0xf]
        %v914 = vld [vmem:[#allocation8 + $0x68] sm:$0xf]
        %v915 = vld [vmem:[#allocation8 + $0x6c] sm:$0xf]
        %v916 = vld [vmem:[#allocation8 + $0x70] sm:$0xf]
        %v917 = vld [vmem:[#allocation8 + $0x74] sm:$0xf]
        %v918 = vld [vmem:[#allocation8 + $0x78] sm:$0xf]
        %v919 = vld [vmem:[#allocation8 + $0x7c] sm:$0xf]
        %v920 = vld [vmem:[#allocation8 + $0x80] sm:$0xf]
        %v921 = vld [vmem:[#allocation8 + $0x84] sm:$0xf]
        %v922 = vld [vmem:[#allocation8 + $0x88] sm:$0xf]
        %v923 = vld [vmem:[#allocation8 + $0x8c] sm:$0xf]
        %v924 = vld [vmem:[#allocation8 + $0x90] sm:$0xf]
        %v925 = vld [vmem:[#allocation8 + $0x94] sm:$0xf]
        %v926 = vld [vmem:[#allocation8 + $0x98] sm:$0xf]
        %v927 = vld [vmem:[#allocation8 + $0x9c] sm:$0xf]
        %v928 = vld [vmem:[#allocation8 + $0xa0] sm:$0xf]
        %v929 = vld [vmem:[#allocation8 + $0xa4] sm:$0xf]
        %v930 = vld [vmem:[#allocation8 + $0xa8] sm:$0xf]
        %v931 = vld [vmem:[#allocation8 + $0xac] sm:$0xf]
        %v932 = vld [vmem:[#allocation8 + $0xb0] sm:$0xf]
        %v933 = vld [vmem:[#allocation8 + $0xb4] sm:$0xf]
        %v934 = vld [vmem:[#allocation8 + $0xb8] sm:$0xf]
        %v935 = vld [vmem:[#allocation8 + $0xbc] sm:$0xf]
        %v936 = vld [vmem:[#allocation8 + $0xc0] sm:$0xf]
        %v937 = vld [vmem:[#allocation8 + $0xc4] sm:$0xf]
        %v938 = vld [vmem:[#allocation8 + $0xc8] sm:$0xf]
        %v939 = vld [vmem:[#allocation8 + $0xcc] sm:$0xf]
        %v940 = vld [vmem:[#allocation8 + $0xd0] sm:$0xf]
        %v941 = vld [vmem:[#allocation8 + $0xd4] sm:$0xf]
        %v942 = vld [vmem:[#allocation8 + $0xd8] sm:$0xf]
        %v943 = vld [vmem:[#allocation8 + $0xdc] sm:$0xf]
        %v944 = vld [vmem:[#allocation8 + $0xe0] sm:$0xf]
        %v945 = vld [vmem:[#allocation8 + $0xe4] sm:$0xf]
        %v946 = vld [vmem:[#allocation8 + $0xe8] sm:$0xf]
        %v947 = vld [vmem:[#allocation8 + $0xec] sm:$0xf]
        %v948 = vld [vmem:[#allocation8 + $0xf0] sm:$0xf]
        %v949 = vld [vmem:[#allocation8 + $0xf4] sm:$0xf]
        %v950 = vld [vmem:[#allocation8 + $0xf8] sm:$0xf]
        %v951 = vld [vmem:[#allocation8 + $0xfc] sm:$0xf]
        %v952 = vld [vmem:[%s4] sm:$0x1]
        %v954 = vlaneseq
        %v955 = vshrl.u32 %v954, 7
        %v956 = vsub.s32 0, %v955
        %v957 = vrot.slane %v952, %v956
        %v1023 = vunpack.c.l.b16 %v888
        %v1024 = vunpack.c.l.b16 %v889
        %v1025 = vunpack.c.l.b16 %v890
        %v1026 = vunpack.c.l.b16 %v891
        %v1027 = vunpack.c.l.b16 %v892
        %v1028 = vunpack.c.l.b16 %v893
        %v1029 = vunpack.c.l.b16 %v894
        %v1030 = vunpack.c.l.b16 %v895
        %v1031 = vunpack.c.l.b16 %v896
        %v1032 = vunpack.c.l.b16 %v897
        %v1033 = vunpack.c.l.b16 %v898
        %v1034 = vunpack.c.l.b16 %v899
        %v1035 = vunpack.c.l.b16 %v900
        %v1036 = vunpack.c.l.b16 %v901
        %v1037 = vunpack.c.l.b16 %v902
        %v1038 = vunpack.c.l.b16 %v903
        %v1039 = vunpack.c.l.b16 %v904
        %v1040 = vunpack.c.l.b16 %v905
        %v1041 = vunpack.c.l.b16 %v906
        %v1042 = vunpack.c.l.b16 %v907
        %v1043 = vunpack.c.l.b16 %v908
        %v1044 = vunpack.c.l.b16 %v909
        %v1045 = vunpack.c.l.b16 %v910
        %v1046 = vunpack.c.l.b16 %v911
        %v1047 = vunpack.c.l.b16 %v912
        %v1048 = vunpack.c.l.b16 %v913
        %v1049 = vunpack.c.l.b16 %v914
        %v1050 = vunpack.c.l.b16 %v915
        %v1051 = vunpack.c.l.b16 %v916
        %v1052 = vunpack.c.l.b16 %v917
        %v1053 = vunpack.c.l.b16 %v918
        %v1054 = vunpack.c.l.b16 %v919
        %v1055 = vunpack.c.l.b16 %v920
        %v1056 = vunpack.c.l.b16 %v921
        %v1057 = vunpack.c.l.b16 %v922
        %v1058 = vunpack.c.l.b16 %v923
        %v1059 = vunpack.c.l.b16 %v924
        %v1060 = vunpack.c.l.b16 %v925
        %v1061 = vunpack.c.l.b16 %v926
        %v1062 = vunpack.c.l.b16 %v927
        %v1063 = vunpack.c.l.b16 %v928
        %v1064 = vunpack.c.l.b16 %v929
        %v1065 = vunpack.c.l.b16 %v930
        %v1066 = vunpack.c.l.b16 %v931
        %v1067 = vunpack.c.l.b16 %v932
        %v1068 = vunpack.c.l.b16 %v933
        %v1069 = vunpack.c.l.b16 %v934
        %v1070 = vunpack.c.l.b16 %v935
        %v1071 = vunpack.c.l.b16 %v936
        %v1072 = vunpack.c.l.b16 %v937
        %v1073 = vunpack.c.l.b16 %v938
        %v1074 = vunpack.c.l.b16 %v939
        %v1075 = vunpack.c.l.b16 %v940
        %v1076 = vunpack.c.l.b16 %v941
        %v1077 = vunpack.c.l.b16 %v942
        %v1078 = vunpack.c.l.b16 %v943
        %v1079 = vunpack.c.l.b16 %v944
        %v1080 = vunpack.c.l.b16 %v945
        %v1081 = vunpack.c.l.b16 %v946
        %v1082 = vunpack.c.l.b16 %v947
        %v1083 = vunpack.c.l.b16 %v948
        %v1084 = vunpack.c.l.b16 %v949
        %v1085 = vunpack.c.l.b16 %v950
        %v1086 = vunpack.c.l.b16 %v951
        %v1087 = vpack.c.b16 %v1024, %v1023
        %v1088 = vpack.c.b16 %v1026, %v1025
        %v1089 = vpack.c.b16 %v1028, %v1027
        %v1090 = vpack.c.b16 %v1030, %v1029
        %v1091 = vpack.c.b16 %v1032, %v1031
        %v1092 = vpack.c.b16 %v1034, %v1033
        %v1093 = vpack.c.b16 %v1036, %v1035
        %v1094 = vpack.c.b16 %v1038, %v1037
        %v1095 = vpack.c.b16 %v1040, %v1039
        %v1096 = vpack.c.b16 %v1042, %v1041
        %v1097 = vpack.c.b16 %v1044, %v1043
        %v1098 = vpack.c.b16 %v1046, %v1045
        %v1099 = vpack.c.b16 %v1048, %v1047
        %v1100 = vpack.c.b16 %v1050, %v1049
        %v1101 = vpack.c.b16 %v1052, %v1051
        %v1102 = vpack.c.b16 %v1054, %v1053
        %v1103 = vpack.c.b16 %v1056, %v1055
        %v1104 = vpack.c.b16 %v1058, %v1057
        %v1105 = vpack.c.b16 %v1060, %v1059
        %v1106 = vpack.c.b16 %v1062, %v1061
        %v1107 = vpack.c.b16 %v1064, %v1063
        %v1108 = vpack.c.b16 %v1066, %v1065
        %v1109 = vpack.c.b16 %v1068, %v1067
        %v1110 = vpack.c.b16 %v1070, %v1069
        %v1111 = vpack.c.b16 %v1072, %v1071
        %v1112 = vpack.c.b16 %v1074, %v1073
        %v1113 = vpack.c.b16 %v1076, %v1075
        %v1114 = vpack.c.b16 %v1078, %v1077
        %v1115 = vpack.c.b16 %v1080, %v1079
        %v1116 = vpack.c.b16 %v1082, %v1081
        %v1117 = vpack.c.b16 %v1084, %v1083
        %v1118 = vpack.c.b16 %v1086, %v1085
        %1151 = vmatprep.subr.bf16.mxu0 0
        %1152 = vmatpush1.bf16.msra.mxu0 %v1094
        %1153 = vmatprep.subr.bf16.mxu0 0
        %1154 = vmatpush1.bf16.msra.mxu0 %v1093
        %1155 = vmatprep.subr.bf16.mxu0 0
        %1156 = vmatpush1.bf16.msra.mxu0 %v1092
        %1157 = vmatprep.subr.bf16.mxu0 0
        %1158 = vmatpush1.bf16.msra.mxu0 %v1091
        %1159 = vmatprep.subr.bf16.mxu0 0
        %1160 = vmatpush1.bf16.msra.mxu0 %v1090
        %1161 = vmatprep.subr.bf16.mxu0 0
        %1162 = vmatpush1.bf16.msra.mxu0 %v1089
        %1163 = vmatprep.subr.bf16.mxu0 0
        %1164 = vmatpush1.bf16.msra.mxu0 %v1088
        %1165 = vmatprep.subr.bf16.mxu0 0
        %1166 = vmatpush1.bf16.msra.mxu0 %v1087
        %1167 = vmatprep.subr.bf16.mxu0 0
        %1168 = vmatpush2.bf16.msra.mxu0 %v1102
        %1169 = vmatprep.subr.bf16.mxu0 0
        %1170 = vmatpush2.bf16.msra.mxu0 %v1101
        %1171 = vmatprep.subr.bf16.mxu0 0
        %1172 = vmatpush2.bf16.msra.mxu0 %v1100
        %1173 = vmatprep.subr.bf16.mxu0 0
        %1174 = vmatpush2.bf16.msra.mxu0 %v1099
        %1175 = vmatprep.subr.bf16.mxu0 0
        %1176 = vmatpush2.bf16.msra.mxu0 %v1098
        %1177 = vmatprep.subr.bf16.mxu0 0
        %1178 = vmatpush2.bf16.msra.mxu0 %v1097
        %1179 = vmatprep.subr.bf16.mxu0 0
        %1180 = vmatpush2.bf16.msra.mxu0 %v1096
        %1181 = vmatprep.subr.bf16.mxu0 0
        %1182 = vmatpush2.bf16.msra.mxu0 %v1095
        %1183 = vmatprep.mubr.bf16.mxu0 %v857
        %1184 = vmatmul.mubr.bf16.gmra.mxu0 %v856
        %v1185 = vpop.f32.mrf.mxu0
        %v1186 = vadd.f32 %v957, %v1185
        %v1187 = vpop.f32.mrf.mxu0
        %v1188 = vpop.f32.mrf.mxu0
        %v1189 = vadd.f32 %v957, %v1188
        %v1190 = vpop.f32.mrf.mxu0
        %1191 = vmatprep.mubr.bf16.mxu0 %v861
        %1192 = vmatmul.mubr.bf16.gmra.mxu0 %v860
        %v1193 = vpop.f32.mrf.mxu0
        %v1194 = vadd.f32 %v957, %v1193
        %v1195 = vpop.f32.mrf.mxu0
        %v1196 = vpop.f32.mrf.mxu0
        %v1197 = vadd.f32 %v957, %v1196
        %v1198 = vpop.f32.mrf.mxu0
        %1199 = vmatprep.mubr.bf16.mxu0 %v865
        %1200 = vmatmul.mubr.bf16.gmra.mxu0 %v864
        %v1201 = vpop.f32.mrf.mxu0
        %v1202 = vadd.f32 %v957, %v1201
        %v1203 = vpop.f32.mrf.mxu0
        %v1204 = vpop.f32.mrf.mxu0
        %v1205 = vadd.f32 %v957, %v1204
        %v1206 = vpop.f32.mrf.mxu0
        %1207 = vmatprep.mubr.bf16.mxu0 %v869
        %1208 = vmatmul.mubr.bf16.gmra.mxu0 %v868
        %v1209 = vpop.f32.mrf.mxu0
        %v1210 = vadd.f32 %v957, %v1209
        %v1211 = vpop.f32.mrf.mxu0
        %v1212 = vpop.f32.mrf.mxu0
        %v1213 = vadd.f32 %v957, %v1212
        %v1214 = vpop.f32.mrf.mxu0
        %1215 = vmatprep.mubr.bf16.mxu0 %v873
        %1216 = vmatmul.mubr.bf16.gmra.mxu0 %v872
        %v1217 = vpop.f32.mrf.mxu0
        %v1218 = vadd.f32 %v957, %v1217
        %v1219 = vpop.f32.mrf.mxu0
        %v1220 = vpop.f32.mrf.mxu0
        %v1221 = vadd.f32 %v957, %v1220
        %v1222 = vpop.f32.mrf.mxu0
        %1223 = vmatprep.mubr.bf16.mxu0 %v877
        %1224 = vmatmul.mubr.bf16.gmra.mxu0 %v876
        %v1225 = vpop.f32.mrf.mxu0
        %v1226 = vadd.f32 %v957, %v1225
        %v1227 = vpop.f32.mrf.mxu0
        %v1228 = vpop.f32.mrf.mxu0
        %v1229 = vadd.f32 %v957, %v1228
        %v1230 = vpop.f32.mrf.mxu0
        %1231 = vmatprep.mubr.bf16.mxu0 %v881
        %1232 = vmatmul.mubr.bf16.gmra.mxu0 %v880
        %v1233 = vpop.f32.mrf.mxu0
        %v1234 = vadd.f32 %v957, %v1233
        %v1235 = vpop.f32.mrf.mxu0
        %v1236 = vpop.f32.mrf.mxu0
        %v1237 = vadd.f32 %v957, %v1236
        %v1238 = vpop.f32.mrf.mxu0
        %1239 = vmatprep.mubr.bf16.mxu0 %v885
        %1240 = vmatmul.mubr.bf16.gmra.mxu0 %v884
        %v1241 = vpop.f32.mrf.mxu0
        %v1242 = vadd.f32 %v957, %v1241
        %v1243 = vpop.f32.mrf.mxu0
        %v1244 = vpop.f32.mrf.mxu0
        %v1245 = vadd.f32 %v957, %v1244
        %v1246 = vpop.f32.mrf.mxu0
        %1247 = vdwg.mxu0
        %1248 = vmatprep.subr.bf16.mxu0 0
        %1249 = vmatpush1.bf16.msra.mxu0 %v1110
        %1250 = vmatprep.subr.bf16.mxu0 0
        %1251 = vmatpush1.bf16.msra.mxu0 %v1109
        %1252 = vmatprep.subr.bf16.mxu0 0
        %1253 = vmatpush1.bf16.msra.mxu0 %v1108
        %1254 = vmatprep.subr.bf16.mxu0 0
        %1255 = vmatpush1.bf16.msra.mxu0 %v1107
        %1256 = vmatprep.subr.bf16.mxu0 0
        %1257 = vmatpush1.bf16.msra.mxu0 %v1106
        %1258 = vmatprep.subr.bf16.mxu0 0
        %1259 = vmatpush1.bf16.msra.mxu0 %v1105
        %1260 = vmatprep.subr.bf16.mxu0 0
        %1261 = vmatpush1.bf16.msra.mxu0 %v1104
        %1262 = vmatprep.subr.bf16.mxu0 0
        %1263 = vmatpush1.bf16.msra.mxu0 %v1103
        %1264 = vmatprep.subr.bf16.mxu0 0
        %1265 = vmatpush2.bf16.msra.mxu0 %v1118
        %1266 = vmatprep.subr.bf16.mxu0 0
        %1267 = vmatpush2.bf16.msra.mxu0 %v1117
        %1268 = vmatprep.subr.bf16.mxu0 0
        %1269 = vmatpush2.bf16.msra.mxu0 %v1116
        %1270 = vmatprep.subr.bf16.mxu0 0
        %1271 = vmatpush2.bf16.msra.mxu0 %v1115
        %1272 = vmatprep.subr.bf16.mxu0 0
        %1273 = vmatpush2.bf16.msra.mxu0 %v1114
        %1274 = vmatprep.subr.bf16.mxu0 0
        %1275 = vmatpush2.bf16.msra.mxu0 %v1113
        %1276 = vmatprep.subr.bf16.mxu0 0
        %1277 = vmatpush2.bf16.msra.mxu0 %v1112
        %1278 = vmatprep.subr.bf16.mxu0 0
        %1279 = vmatpush2.bf16.msra.mxu0 %v1111
        %1280 = vmatprep.mubr.bf16.mxu0 %v859
        %1281 = vmatmul.mubr.bf16.gmra.mxu0 %v858
        %v1282 = vpop.f32.mrf.mxu0
        %v1283 = vadd.f32 %v1186, %v1282
        %v1284 = vpop.f32.mrf.mxu0
        %v1285 = vpop.f32.mrf.mxu0
        %v1286 = vadd.f32 %v1189, %v1285
        %v1287 = vpop.f32.mrf.mxu0
        %1288 = vmatprep.mubr.bf16.mxu0 %v863
        %1289 = vmatmul.mubr.bf16.gmra.mxu0 %v862
        %v1290 = vpop.f32.mrf.mxu0
        %v1291 = vadd.f32 %v1194, %v1290
        %v1292 = vpop.f32.mrf.mxu0
        %v1293 = vpop.f32.mrf.mxu0
        %v1294 = vadd.f32 %v1197, %v1293
        %v1295 = vpop.f32.mrf.mxu0
        %1296 = vmatprep.mubr.bf16.mxu0 %v867
        %1297 = vmatmul.mubr.bf16.gmra.mxu0 %v866
        %v1298 = vpop.f32.mrf.mxu0
        %v1299 = vadd.f32 %v1202, %v1298
        %v1300 = vpop.f32.mrf.mxu0
        %v1301 = vpop.f32.mrf.mxu0
        %v1302 = vadd.f32 %v1205, %v1301
        %v1303 = vpop.f32.mrf.mxu0
        %1304 = vmatprep.mubr.bf16.mxu0 %v871
        %1305 = vmatmul.mubr.bf16.gmra.mxu0 %v870
        %v1306 = vpop.f32.mrf.mxu0
        %v1307 = vadd.f32 %v1210, %v1306
        %v1308 = vpop.f32.mrf.mxu0
        %v1309 = vpop.f32.mrf.mxu0
        %v1310 = vadd.f32 %v1213, %v1309
        %v1311 = vpop.f32.mrf.mxu0
        %1312 = vmatprep.mubr.bf16.mxu0 %v875
        %1313 = vmatmul.mubr.bf16.gmra.mxu0 %v874
        %v1314 = vpop.f32.mrf.mxu0
        %v1315 = vadd.f32 %v1218, %v1314
        %v1316 = vpop.f32.mrf.mxu0
        %v1317 = vpop.f32.mrf.mxu0
        %v1318 = vadd.f32 %v1221, %v1317
        %v1319 = vpop.f32.mrf.mxu0
        %1320 = vmatprep.mubr.bf16.mxu0 %v879
        %1321 = vmatmul.mubr.bf16.gmra.mxu0 %v878
        %v1322 = vpop.f32.mrf.mxu0
        %v1323 = vadd.f32 %v1226, %v1322
        %v1324 = vpop.f32.mrf.mxu0
        %v1325 = vpop.f32.mrf.mxu0
        %v1326 = vadd.f32 %v1229, %v1325
        %v1327 = vpop.f32.mrf.mxu0
        %1328 = vmatprep.mubr.bf16.mxu0 %v883
        %1329 = vmatmul.mubr.bf16.gmra.mxu0 %v882
        %v1330 = vpop.f32.mrf.mxu0
        %v1331 = vadd.f32 %v1234, %v1330
        %v1332 = vpop.f32.mrf.mxu0
        %v1333 = vpop.f32.mrf.mxu0
        %v1334 = vadd.f32 %v1237, %v1333
        %v1335 = vpop.f32.mrf.mxu0
        %1336 = vmatprep.mubr.bf16.mxu0 %v887
        %1337 = vmatmul.mubr.bf16.gmra.mxu0 %v886
        %v1338 = vpop.f32.mrf.mxu0
        %v1339 = vadd.f32 %v1242, %v1338
        %v1340 = vpop.f32.mrf.mxu0
        %v1341 = vpop.f32.mrf.mxu0
        %v1342 = vadd.f32 %v1245, %v1341
        %v1343 = vpop.f32.mrf.mxu0
        %1344 = vdwg.mxu0
        %1345 = vst [vmem:[%s284] sm:$0xff] %v1283
        %1346 = vst [vmem:[%s284 + $0x8] sm:$0xff] %v1286
        %1347 = vst [vmem:[%s284 + $0x10] sm:$0xff] %v1291
        %1348 = vst [vmem:[%s284 + $0x18] sm:$0xff] %v1294
        %1349 = vst [vmem:[%s284 + $0x20] sm:$0xff] %v1299
        %1350 = vst [vmem:[%s284 + $0x28] sm:$0xff] %v1302
        %1351 = vst [vmem:[%s284 + $0x30] sm:$0xff] %v1307
        %1352 = vst [vmem:[%s284 + $0x38] sm:$0xff] %v1310
        %1353 = vst [vmem:[%s284 + $0x40] sm:$0xff] %v1315
        %1354 = vst [vmem:[%s284 + $0x48] sm:$0xff] %v1318
        %1355 = vst [vmem:[%s284 + $0x50] sm:$0xff] %v1323
        %1356 = vst [vmem:[%s284 + $0x58] sm:$0xff] %v1326
        %1357 = vst [vmem:[%s284 + $0x60] sm:$0xff] %v1331
        %1358 = vst [vmem:[%s284 + $0x68] sm:$0xff] %v1334
        %1359 = vst [vmem:[%s284 + $0x70] sm:$0xff] %v1339
        %1360 = vst [vmem:[%s284 + $0x78] sm:$0xff] %v1342
        %s1361 = sand.u32 %s142, 1
        %s1362 = scalar_lea.sflag [#allocation4], %s1361
        %s1363 = sand.u32 %s142, 1
        %s1364 = smul.addr %s1363, 128
        %s1365 = scalar_lea.vmem [#allocation10], %s1364
        // Predicated region
        $region57: #{tpu_custom_call.1} parent=39 // pred_check
          %p1366 = pneg %p152
        $region58: #{tpu_custom_call.1} parent=39 // pred_check_branch
          %1368 = sbr.rel (%p1366) target = $region60
        $region59: #{tpu_custom_call.1} parent=39 // pred_region
          %s1369 = smul.u32 16, %s24
          %s1371 = ssub.s32 2048, 2048
          %1372 = vsyncadd %s1362, %s1371
          %s1373 = smul.addr %s1369, 128
          %s1374 = scalar_lea.hbm %s5, %s1373
          %s1375 = sshll.u32 %s1365, 4
          %s1376 = int_to_ptr.vmem [resolvable:$true] %s1375
          %1381 = dma.vmem_to_hbm [thread:$0]  %s1376, 2048, %s1374, %s1362, 128, 128, 8
        $region60: #{tpu_custom_call.1} parent=39 // pred_fallthru
          _
      $region40: #{tpu_custom_call.1} parent=5 // pred_fallthru
        _
      %p1382 = scmp.le.s32.totalorder 2, %s19
      // Predicated region
      $region61: #{tpu_custom_call.1} parent=5 // pred_check
        %p1383 = pneg %p1382
      $region62: #{tpu_custom_call.1} parent=5 // pred_check_branch
        %1385 = sbr.rel (%p1383) target = $region64
      $region63: #{tpu_custom_call.1} parent=5 // pred_region
        %s1386 = ssub.s32 %s19, 2
        // Predicated region
        $region65: #{tpu_custom_call.1} parent=63 // pred_check
          %p1387 = pneg %p158
        $region66: #{tpu_custom_call.1} parent=63 // pred_check_branch
          %1389 = sbr.rel (%p1387) target = $region68
        $region67: #{tpu_custom_call.1} parent=63 // pred_region
          %s1390 = sand.u32 %s143, 1
          %s1391 = scalar_lea.sflag [#allocation4], %s1390
          %s1392 = sand.u32 %s143, 1
          %s1393 = smul.addr %s1392, 128
          %s1394 = scalar_lea.vmem [#allocation10], %s1393
          %1395 = dma.done %s1391, 2048
        $region68: #{tpu_custom_call.1} parent=63 // pred_fallthru
          _
      $region64: #{tpu_custom_call.1} parent=5 // pred_fallthru
        _
    $region6: #{tpu_custom_call.1} parent=1 // loop_footer
      %s23 = sadd.s32 1, %s19
    $region7: #{tpu_custom_call.1} parent=1 // loop_footer_branch
      %18 = sbr.rel target = $region3
    $region8: #{tpu_custom_call.1} parent=1 // loop_exit
      _
    %1396 = vsyncpa [#allocation3], 1
    %s1397 = scalar_lea.sflag [#allocation3], 1
    %1398 = vsyncpa %s1397, 1
    %1399 = vsyncpa [#allocation6], 1
    %1400 = vsyncpa [#allocation9], 1
    %1401 = vsyncpa [#allocation4], 1
    %s1402 = scalar_lea.sflag [#allocation4], 1
    %1403 = vsyncpa %s1402, 1

</llo_original>
